<compile_context>
chip_gen: v7x
topology: tpu7x:2x2x1
jax: 0.10.0
libtpu: 0.0.40
codegen_flags: <defaults>
</compile_context>

<pallas_src>
import jax
import jax.numpy as jnp
from jax.experimental import pallas as pl
from jax.experimental.pallas import tpu as pltpu


def _round_up(x, m):
    return ((x + m - 1) // m) * m


# ----------------------------------------------------------------------------
# Kernel
# ----------------------------------------------------------------------------
def fused_id_embed_kernel(obs_off_ref, fused_ref, out_ref):
    """out = multi_hot(obs_off) @ fused_flat  (Linear + bias pre-folded offline).

    obs_off_ref : (TILE_B, N)     int32, ids already offset by component*Vmax
    fused_ref   : (NV_pad, E_pad) table-major fused weights (resident in VMEM)
    out_ref     : (TILE_B, E_pad) f32
    """
    tile_b, n = obs_off_ref.shape
    nv_pad = fused_ref.shape[0]

    ob = obs_off_ref[...]                                   # load obs tile once
    lane = jax.lax.broadcasted_iota(jnp.int32, (tile_b, nv_pad), 1)

    # Multi-hot over the stacked vocab axis.  Component lane ranges are
    # disjoint (offsets pre-added + ids clamped in the wrapper), so boolean OR
    # == add, and a single cast suffices.  N is small & static -> unrolled.
    hot = lane == ob[:, 0:1]
    for i in range(1, n):
        hot = hot | (lane == ob[:, i:i + 1])

    # Single MXU matmul: gather + concat + Linear + bias all at once.
    out_ref[...] = jnp.dot(hot.astype(fused_ref.dtype), fused_ref[...],
                           preferred_element_type=jnp.float32
                           ).astype(out_ref.dtype)


# ----------------------------------------------------------------------------
# One-time parameter fold (call at load time, NOT per forward)
# ----------------------------------------------------------------------------
def prepare_fused_params(tables, w, b, *, lane_dense_out=True,
                         table_dtype=jnp.float32):
    """Folds the Linear into the embedding tables:  fused[i] = tables[i] @ W_i,
    with the bias folded into component 0's table.

    tables : (N, Vmax, H) stacked nn.Embedding weights (zero-padded per vocab)
    w      : (N*H, E)     == torch linear.weight.T   (so y = x @ w + b)
    b      : (1, E) or (E,)
    lane_dense_out : pad E to 128 lanes (unmasked vst).  Set False on v5e to
                     quarter the HBM writeback bytes (E stays the full dim).
    table_dtype    : jnp.bfloat16 on v6e/v7x halves the resident footprint.

    Returns (fused_flat, meta) to pass to id_embedder_forward.
    """
    N, Vmax, H = tables.shape
    E = w.shape[-1]
    w3 = w.reshape(N, H, E)
    fused = jnp.einsum("nvh,nhe->nve", tables, w3,
                       preferred_element_type=jnp.float32)      # (N, Vmax, E)
    fused = fused.at[0].add(jnp.reshape(b, (1, E)))             # bias: added once
    fused_flat = fused.reshape(N * Vmax, E)

    E_pad = _round_up(E, 128) if lane_dense_out else E
    NV_pad = _round_up(N * Vmax, 8)
    fused_flat = jnp.pad(fused_flat,
                         ((0, NV_pad - N * Vmax), (0, E_pad - E)))
    fused_flat = fused_flat.astype(table_dtype)
    return fused_flat, (N, Vmax, E)


# ----------------------------------------------------------------------------
# Per-call forward: offset obs -> single pallas_call -> slice
# ----------------------------------------------------------------------------
_MAX_TILE_B = 1024   # ~0.35 us per grid step -> big tiles; a 1024x128 f32 out
                     # tile is 512 KiB double-buffered, far under scoped VMEM.


def id_embedder_forward(obs, fused_flat, meta):
    """obs: (B,) or (B, N) integer ids.  fused_flat/meta from prepare_fused_params."""
    N, Vmax, E = meta
    NV_pad, E_pad = fused_flat.shape

    if obs.ndim == 1:                       # mirror torch's unsqueeze(-1) path
        obs = obs[:, None]
    obs = obs.astype(jnp.int32)
    B = obs.shape[0]

    # Clamp so an out-of-range id can never bleed into another component's
    # lane range (torch would raise an index error; here it hits the zero row).
    obs = jnp.clip(obs, 0, Vmax - 1)
    # Pre-add the stacked-vocab offsets (keeps int adds/casts out of the kernel).
    obs_off = obs + (jnp.arange(N, dtype=jnp.int32) * Vmax)[None, :]

    # Batch tiling: single grid step when B fits one tile, else 1024-row tiles.
    tile_b = _round_up(max(B, 1), 8) if B <= _MAX_TILE_B else _MAX_TILE_B
    B_pad = _round_up(B, tile_b)
    if B_pad != B:
        obs_off = jnp.pad(obs_off, ((0, B_pad - B), (0, 0)))
    grid = (B_pad // tile_b,)

    # Raise the scoped VMEM limit only if the double-buffered working set
    # actually needs it (big tables / tiles).
    itemsize = jnp.dtype(fused_flat.dtype).itemsize
    vmem_need = 2 * (tile_b * N * 4 + NV_pad * E_pad * itemsize
                     + tile_b * E_pad * 4)
    cp_kwargs = dict(dimension_semantics=("parallel",))   # 2 TCs on v7x if grid > 1
    if vmem_need > 24 * 1024 * 1024:
        cp_kwargs["vmem_limit_bytes"] = min(int(vmem_need * 1.5),
                                            100 * 1024 * 1024)

    out = pl.pallas_call(
        fused_id_embed_kernel,
        out_shape=jax.ShapeDtypeStruct((B_pad, E_pad), jnp.float32),
        grid=grid,
        in_specs=[
            pl.BlockSpec((tile_b, N), lambda i: (i, 0)),        # obs tile
            pl.BlockSpec((NV_pad, E_pad), lambda i: (0, 0)),    # fused table, resident
            # TODO(synk): if NV_pad*E_pad*itemsize grows past ~8-16 MiB (budget
            # against v7x's 64 MiB VMEM first), tile the NV axis with an extra
            # "arbitrary" grid dim + f32 accumulator scratch, and single-buffer
            # the table (pipeline_mode=pl.Buffered(1)).
        ],
        out_specs=pl.BlockSpec((tile_b, E_pad), lambda i: (i, 0)),
        compiler_params=pltpu.CompilerParams(**cp_kwargs),
    )(obs_off, fused_flat)

    if B_pad != B or E_pad != E:
        # In real use, fold this slice into the consumer of the embedding.
        out = out[:B, :E]
    return out


# ----------------------------------------------------------------------------
# Pure-JAX reference matching torch IDEmbedder semantics (unfused)
# ----------------------------------------------------------------------------
def reference_forward(obs, tables, w, b):
    if obs.ndim == 1:
        obs = obs[:, None]
    embeds = [tables[i][obs[:, i]] for i in range(obs.shape[1])]
    cat = jnp.concatenate(embeds, axis=-1)
    return cat @ w + jnp.reshape(b, (1, -1))


if __name__ == "__main__":
    # Module config (SMALL, consistent with IDEmbedder.__init__):
    observation_space = [7, 5, 11]   # per-component vocab sizes
    embed_dim = 32
    hidden_size = 32                 # fixed in the module
    N = len(observation_space)
    Vmax = 16                        # pad vocabs to a common size for stacking

    key = jax.random.PRNGKey(0)
    k_obs, k_tab, k_w, k_b, k_obs2 = jax.random.split(key, 5)

    # Deterministic synthetic parameters (shapes from __init__; not a checkpoint).
    tab_keys = jax.random.split(k_tab, N)
    tables = jnp.zeros((N, Vmax, hidden_size), dtype=jnp.float32)
    for i, vocab in enumerate(observation_space):
        t = jax.random.normal(tab_keys[i], (vocab, hidden_size), dtype=jnp.float32)
        tables = tables.at[i, :vocab, :].set(t)

    # torch nn.Linear stores weight as (out, in); keep W = weight.T so y = x @ W + b.
    w = (jax.random.normal(k_w, (N * hidden_size, embed_dim), dtype=jnp.float32)
         * (1.0 / jnp.sqrt(N * hidden_size)))
    b = jax.random.normal(k_b, (1, embed_dim), dtype=jnp.float32) * 0.01

    highs = jnp.array(observation_space, dtype=jnp.float32)

    def make_obs(k, batch):
        u = jax.random.uniform(k, (batch, N))
        return jnp.floor(u * highs).astype(jnp.int32)   # 0 <= obs[:, i] < vocab_i

    # ---- offline fold: runs ONCE at parameter-load time ----
    fused_dense, meta = prepare_fused_params(tables, w, b, lane_dense_out=True)
    fused_narrow, meta_n = prepare_fused_params(tables, w, b, lane_dense_out=False)
    fused_dense, fused_narrow = jax.block_until_ready((fused_dense, fused_narrow))

    # 1) small batch -> single grid step, lane-dense output
    obs_small = make_obs(k_obs, 8)
    out_small = jax.block_until_ready(
        id_embedder_forward(obs_small, fused_dense, meta))
    ref_small = reference_forward(obs_small, tables, w, b)
    assert out_small.shape == (8, embed_dim)
    assert jnp.allclose(out_small, ref_small, atol=1e-4, rtol=1e-4), \
        "small-batch mismatch vs pure-JAX reference"

    # 2) larger batch -> multi-step grid (1024-row tiles) + batch padding
    obs_big = make_obs(k_obs2, 2052)
    out_big = jax.block_until_ready(
        id_embedder_forward(obs_big, fused_dense, meta))
    ref_big = reference_forward(obs_big, tables, w, b)
    assert out_big.shape == (2052, embed_dim)
    assert jnp.allclose(out_big, ref_big, atol=1e-4, rtol=1e-4), \
        "large-batch mismatch vs pure-JAX reference"

    # 3) unpadded-E output path (v5e writeback-friendly)
    out_narrow = jax.block_until_ready(
        id_embedder_forward(obs_small, fused_narrow, meta_n))
    assert jnp.allclose(out_narrow, ref_small, atol=1e-4, rtol=1e-4), \
        "narrow-output mismatch vs pure-JAX reference"

    print("KERNEL_OK")
</pallas_src>

<mosaic_0001>
module attributes {stable_mosaic.version = 11 : i64} {
  func.func @fused_id_embed_kernel(%arg0: i32, %arg1: memref<8x3xi32, #tpu.memory_space<vmem>>, %arg2: memref<48x128xf32, #tpu.memory_space<vmem>>, %arg3: memref<8x128xf32, #tpu.memory_space<vmem>>) attributes {dimension_semantics = [#tpu.dimension_semantics<parallel>], iteration_bounds = array<i64: 1>, scalar_prefetch = 0 : i64, scratch_operands = 0 : i64, tpu.core_type = #tpu.core_type<tc>, window_params = [{transform_indices = @transform_0, window_bounds = array<i64: 8, 3>}, {pipeline_mode = #tpu.pipeline_mode<synchronous>, transform_indices = @transform_1, window_bounds = array<i64: 48, 128>}, {transform_indices = @transform_2, window_bounds = array<i64: 8, 128>}]} {
    %c0 = arith.constant 0 : index
    %c0_0 = arith.constant 0 : index
    %0 = vector.load %arg1[%c0, %c0_0] : memref<8x3xi32, #tpu.memory_space<vmem>>, vector<8x3xi32>
    %1 = tpu.iota {dimensions = array<i32: 1>} : vector<8x48xi32>
    %2 = vector.extract_strided_slice %0 {offsets = [0, 0], sizes = [8, 1], strides = [1, 1]} : vector<8x3xi32> to vector<8x1xi32>
    %3 = vector.broadcast %2 : vector<8x1xi32> to vector<8x48xi32>
    %4 = arith.cmpi eq, %1, %3 : vector<8x48xi32>
    %5 = vector.extract_strided_slice %0 {offsets = [0, 1], sizes = [8, 1], strides = [1, 1]} : vector<8x3xi32> to vector<8x1xi32>
    %6 = vector.broadcast %5 : vector<8x1xi32> to vector<8x48xi32>
    %7 = arith.cmpi eq, %1, %6 : vector<8x48xi32>
    %8 = arith.ori %4, %7 : vector<8x48xi1>
    %9 = vector.extract_strided_slice %0 {offsets = [0, 2], sizes = [8, 1], strides = [1, 1]} : vector<8x3xi32> to vector<8x1xi32>
    %10 = vector.broadcast %9 : vector<8x1xi32> to vector<8x48xi32>
    %11 = arith.cmpi eq, %1, %10 : vector<8x48xi32>
    %12 = arith.ori %8, %11 : vector<8x48xi1>
    %13 = arith.extui %12 : vector<8x48xi1> to vector<8x48xi32>
    %14 = arith.sitofp %13 : vector<8x48xi32> to vector<8x48xf32>
    %c0_1 = arith.constant 0 : index
    %c0_2 = arith.constant 0 : index
    %15 = vector.load %arg2[%c0_1, %c0_2] : memref<48x128xf32, #tpu.memory_space<vmem>>, vector<48x128xf32>
    %cst = arith.constant dense<0.000000e+00> : vector<8x128xf32>
    %16 = tpu.matmul %14, %15, %cst {dimension_numbers = #tpu.dot_dimension_numbers<[1], [0], [0], [1], [0, 0, 1, 1], [], []>} : vector<8x48xf32>, vector<48x128xf32>, vector<8x128xf32> -> vector<8x128xf32>
    %c0_3 = arith.constant 0 : index
    %c0_4 = arith.constant 0 : index
    %17 = vector.load %arg3[%c0_3, %c0_4] : memref<8x128xf32, #tpu.memory_space<vmem>>, vector<8x128xf32>
    tpu.vector_store %arg3[%c0_3, %c0_4], %16 {strides = array<i32>} : memref<8x128xf32, #tpu.memory_space<vmem>>, vector<8x128xf32>,
    return
  }
  func.func @transform_0(%arg0: i32) -> (i32, i32) {
    %c0_i32 = arith.constant 0 : i32
    %c0_i32_0 = arith.constant 0 : i32
    return %arg0, %c0_i32 : i32, i32
  }
  func.func @transform_1(%arg0: i32) -> (i32, i32) {
    %c0_i32 = arith.constant 0 : i32
    %c0_i32_0 = arith.constant 0 : i32
    %c0_i32_1 = arith.constant 0 : i32
    return %c0_i32, %c0_i32_0 : i32, i32
  }
  func.func @transform_2(%arg0: i32) -> (i32, i32) {
    %c0_i32 = arith.constant 0 : i32
    %c0_i32_0 = arith.constant 0 : i32
    return %arg0, %c0_i32 : i32, i32
  }
}

</mosaic_0001>

<llo_original>
// kernel: tpu_custom_call.1
$region0: #{tpu_custom_call.1}
  #allocation0 [shape = 'u32[]', space=smem, size = 0x4, offset = 0x4, fixed_abs, tag = 'smem constant byte address 0x4 - core index']
  #allocation1 [shape = 'u32[144,128]{1,0:T(1,128)}', space=vmem, size = 0x12000, scoped, tag = 'internal scratch']
  %s0 = inlined_call_operand.vmem [shape: s32[8,3], index: 0, kind: input, shape index: {}]
  %s1 = inlined_call_operand.hbm [shape: f32[48,128], index: 1, kind: input, shape index: {}]
  %s2 = inlined_call_operand.hbm [shape: f32[8,128], index: 2, kind: output, shape index: {}]
  %s3 = sld [smem:[#allocation0]]
  $region22: #{tpu_custom_call.1} parent=0
    _
  %s5 = ssub.s32 1, %s3
  %s6 = scalar_select 0, %s5, %s3
  $region1: #{tpu_custom_call.1} parent=0
    #allocation2 [shape = 'u8[24576]{0}', space=vmem, size = 0x6000, scoped, tag = 'input window, operand 1, single buffered']
    #allocation3 [shape = 's32[1]{0}', space=sflag, size = 0x4, scoped, tag = 'scoped memory for tpu_custom_call.1']
    #allocation4 [shape = 's32[1]{0}', space=sflag, size = 0x4, scoped, tag = 'scoped memory for tpu_custom_call.1']
    #allocation5 [shape = 'u8[4096]{0}', space=vmem, size = 0x1000, scoped, tag = 'output window, operand 0, single buffered']
    %7 = vsyncpa [#allocation3], 0
    %8 = vsyncpa [#allocation4], 0
    // Predicated region
    $region2: #{tpu_custom_call.1} parent=1 // pred_check
      _
    $region3: #{tpu_custom_call.1} parent=1 // pred_check_branch
      %10 = sbr.rel (0) target = $region5
    $region4: #{tpu_custom_call.1} parent=1 // pred_region
      _
    $region5: #{tpu_custom_call.1} parent=1 // pred_fallthru
      _
    // Predicated region
    $region6: #{tpu_custom_call.1} parent=1 // pred_check
      _
    $region7: #{tpu_custom_call.1} parent=1 // pred_check_branch
      %12 = sbr.rel (0) target = $region9
    $region8: #{tpu_custom_call.1} parent=1 // pred_region
      %s14 = ssub.s32 768, 768
      %15 = vsyncadd [#allocation3], %s14
      %s16 = sshll.u32 [#allocation2], 4
      %s17 = int_to_ptr.vmem [resolvable:$true] %s16
      %22 = dma.hbm_to_vmem [thread:$0]  %s1, 768, %s17, [#allocation3], 128, 128, 8
    $region9: #{tpu_custom_call.1} parent=1 // pred_fallthru
      _
    // Predicated region
    $region10: #{tpu_custom_call.1} parent=1 // pred_check
      _
    $region11: #{tpu_custom_call.1} parent=1 // pred_check_branch
      %24 = sbr.rel (0) target = $region13
    $region12: #{tpu_custom_call.1} parent=1 // pred_region
      %25 = dma.done [#allocation3], 768
    $region13: #{tpu_custom_call.1} parent=1 // pred_fallthru
      _
    %v26 = vld [vmem:[%s0] sm:$0xff]
    %v27 = vlaneseq
    %v28 = vand.u32 %v27, 127
    %29 = vset.pattern.permute.xlu0 0
    %30 = vperm.xlu0 %29, %v26
    %v31 = vpop.permute.xlu0 %30
    %vm32 = vcmp.eq.s32.totalorder %v28, %v31
    %33 = vset.pattern.permute.xlu0 1
    %34 = vperm.xlu0 %33, %v26
    %v35 = vpop.permute.xlu0 %34
    %vm36 = vcmp.eq.s32.totalorder %v28, %v35
    %vm37 = vmor %vm32, %vm36
    %38 = vset.pattern.permute.xlu0 2
    %39 = vperm.xlu0 %38, %v26
    %v40 = vpop.permute.xlu0 %39
    %vm41 = vcmp.eq.s32.totalorder %v28, %v40
    %vm42 = vmor %vm37, %vm41
    %v43 = vsel %vm42, 1, 0
    %v44 = vcvt.s32.f32 %v43
    %v45 = vld [vmem:[#allocation2] sm:$0xff]
    %v46 = vld [vmem:[#allocation2 + $0x8] sm:$0xff]
    %v47 = vld [vmem:[#allocation2 + $0x10] sm:$0xff]
    %v48 = vld [vmem:[#allocation2 + $0x18] sm:$0xff]
    %v49 = vld [vmem:[#allocation2 + $0x20] sm:$0xff]
    %v50 = vld [vmem:[#allocation2 + $0x28] sm:$0xff]
    %vm51 = vcmask 392192
    %v53 = vsel %vm51, %v44, 0
    %55 = vmatprep.subr.mxu0 0.0
    %56 = vmatpush1.msra.mxu0 %v45
    %57 = vmatprep.subr.mxu0 0.0
    %58 = vmatpush1.msra.mxu0 %v46
    %59 = vmatprep.subr.mxu0 0.0
    %60 = vmatpush1.msra.mxu0 %v47
    %61 = vmatprep.subr.mxu0 0.0
    %62 = vmatpush1.msra.mxu0 %v48
    %63 = vmatprep.subr.mxu0 0.0
    %64 = vmatpush1.msra.mxu0 %v49
    %65 = vmatprep.subr.mxu0 0.0
    %66 = vmatpush1.msra.mxu0 %v50
    %67 = vmatprep.subr.mxu0 0.0
    %68 = vmatpush1.msra.mxu0 0.0
    %69 = vmatprep.subr.mxu0 0.0
    %70 = vmatpush1.msra.mxu0 0.0
    %71 = vmatprep.subr.mxu0 0.0
    %72 = vmatpush1.msra.mxu0 0.0
    %73 = vmatprep.subr.mxu0 0.0
    %74 = vmatpush1.msra.mxu0 0.0
    %75 = vmatprep.subr.mxu0 0.0
    %76 = vmatpush1.msra.mxu0 0.0
    %77 = vmatprep.subr.mxu0 0.0
    %78 = vmatpush1.msra.mxu0 0.0
    %79 = vmatprep.subr.mxu0 0.0
    %80 = vmatpush1.msra.mxu0 0.0
    %81 = vmatprep.subr.mxu0 0.0
    %82 = vmatpush1.msra.mxu0 0.0
    %83 = vmatprep.subr.mxu0 0.0
    %84 = vmatpush1.msra.mxu0 0.0
    %85 = vmatprep.subr.mxu0 0.0
    %86 = vmatpush1.msra.mxu0 0.0
    %87 = vmatprep.subr.mxu0 0.0
    %88 = vmatpush1.msra.mxu0 0.0
    %89 = vmatprep.subr.mxu0 0.0
    %90 = vmatpush1.msra.mxu0 0.0
    %91 = vmatprep.subr.mxu0 0.0
    %92 = vmatpush1.msra.mxu0 0.0
    %93 = vmatprep.subr.mxu0 0.0
    %94 = vmatpush1.msra.mxu0 0.0
    %95 = vmatprep.subr.mxu0 0.0
    %96 = vmatpush1.msra.mxu0 0.0
    %97 = vmatprep.subr.mxu0 0.0
    %98 = vmatpush1.msra.mxu0 0.0
    %99 = vmatprep.subr.mxu0 0.0
    %100 = vmatpush1.msra.mxu0 0.0
    %101 = vmatprep.subr.mxu0 0.0
    %102 = vmatpush1.msra.mxu0 0.0
    %103 = vmatprep.subr.mxu0 0.0
    %104 = vmatpush1.msra.mxu0 0.0
    %105 = vmatprep.subr.mxu0 0.0
    %106 = vmatpush1.msra.mxu0 0.0
    %107 = vmatprep.subr.mxu0 0.0
    %108 = vmatpush1.msra.mxu0 0.0
    %109 = vmatprep.subr.mxu0 0.0
    %110 = vmatpush1.msra.mxu0 0.0
    %111 = vmatprep.subr.mxu0 0.0
    %112 = vmatpush1.msra.mxu0 0.0
    %113 = vmatprep.subr.mxu0 0.0
    %114 = vmatpush1.msra.mxu0 0.0
    %115 = vmatprep.subr.mxu0 0.0
    %116 = vmatpush1.msra.mxu0 0.0
    %117 = vmatprep.subr.mxu0 0.0
    %118 = vmatpush1.msra.mxu0 0.0
    %119 = vmatprep.mubr.f32.mxu0 0.0
    %120 = vmatmul.mubr.f32.gmra.mrb[0].mxu0 %v53
    %v121 = vpop.f32.mrb[0].mxu0
    %v122 = vadd.f32 0.0, %v121
    %v123 = vpop.f32.mrb[0].mxu0
    %124 = vdwg.mxu0
    %125 = vst [vmem:[#allocation5] sm:$0xff] %v122
    // Predicated region
    $region14: #{tpu_custom_call.1} parent=1 // pred_check
      _
    $region15: #{tpu_custom_call.1} parent=1 // pred_check_branch
      %127 = sbr.rel (0) target = $region17
    $region16: #{tpu_custom_call.1} parent=1 // pred_region
      %s129 = ssub.s32 128, 128
      %130 = vsyncadd [#allocation4], %s129
      %s132 = sshll.u32 [#allocation5], 4
      %s133 = int_to_ptr.vmem [resolvable:$true] %s132
      %135 = dma.vmem_to_hbm [thread:$0]  %s133, 128, %s2, [#allocation4]
    $region17: #{tpu_custom_call.1} parent=1 // pred_fallthru
      _
    // Predicated region
    $region18: #{tpu_custom_call.1} parent=1 // pred_check
      _
    $region19: #{tpu_custom_call.1} parent=1 // pred_check_branch
      %137 = sbr.rel (0) target = $region21
    $region20: #{tpu_custom_call.1} parent=1 // pred_region
      %138 = dma.done [#allocation4], 128
    $region21: #{tpu_custom_call.1} parent=1 // pred_fallthru
      _
    %139 = vsyncpa [#allocation3], 1
    %140 = vsyncpa [#allocation4], 1

</llo_original>
